<compile_context>
chip_gen: v5e
topology: v5e:2x2
jax: 0.10.0
libtpu: 0.0.40
codegen_flags: <defaults>
</compile_context>

<pallas_src>
import functools

import jax
import jax.numpy as jnp
from jax.experimental import pallas as pl
from jax.experimental.pallas import tpu as pltpu

_LANE = 128
_SMALL_FALLBACK_BYTES = 256 * 1024   # below this, skip Pallas entirely
_SPLIT_MIN_BYTES = 1024 * 1024       # min bytes per TC before megacore split pays


def _sublane_multiple(dtype) -> int:
    # f32 -> 8, bf16 -> 16, int8/fp8 -> 32 (packed dtypes pack along sublanes).
    itemsize = jnp.dtype(dtype).itemsize
    return max(8, 32 // max(itemsize, 1))


@functools.lru_cache(maxsize=1)
def _chip_params():
    """(target_block_bytes, num_tensorcores) for the local TPU generation."""
    try:
        kind = jax.devices()[0].device_kind.lower()
    except Exception:  # pragma: no cover - defensive; default to 1-TC settings
        kind = ""
    is_v7x = ("v7" in kind) or ("tpu7" in kind)
    target_block_bytes = (4 if is_v7x else 2) * 1024 * 1024
    num_tensorcores = 2 if is_v7x else 1
    return target_block_bytes, num_tensorcores


def _scale_kernel(scale_ref, x_ref, o_ref):
    # scale_ref: (1,) f32 in SMEM; x_ref / o_ref: (tile_rows, 128) VMEM tiles.
    # Multiply in f32 (VALU slack is huge in this DMA-bound kernel), cast at
    # the store so the output dtype matches the input.
    x_f32 = x_ref[...].astype(jnp.float32)
    o_ref[...] = (x_f32 * scale_ref[0]).astype(o_ref.dtype)


def _scale_2d(x2d: jax.Array, scale_arr: jax.Array) -> jax.Array:
    rows, lane = x2d.shape
    dtype = x2d.dtype
    itemsize = jnp.dtype(dtype).itemsize
    sub = _sublane_multiple(dtype)
    target_block_bytes, num_tc = _chip_params()
    target_rows = max(sub, target_block_bytes // (lane * itemsize))
    total_bytes = rows * lane * itemsize

    if rows <= target_rows:
        # Whole array fits in one block.
        if num_tc > 1 and rows > sub and total_bytes >= 2 * _SPLIT_MIN_BYTES:
            # v7x megacore: split into 2 steps only when each half is big
            # enough that the extra step overhead is amortized.
            half = -(-rows // 2)
            tile_rows = ((half + sub - 1) // sub) * sub
            if tile_rows >= rows:
                tile_rows = rows
        else:
            # 1-TC chips (or small tensors): single grid step, block == array.
            tile_rows = rows
    else:
        tile_rows = target_rows  # multiple of the sublane granule

    grid = (pl.cdiv(rows, tile_rows),)  # Pallas masks the partial last block.

    return pl.pallas_call(
        _scale_kernel,
        out_shape=jax.ShapeDtypeStruct((rows, lane), dtype),
        grid_spec=pltpu.PrefetchScalarGridSpec(
            num_scalar_prefetch=0,
            grid=grid,
            in_specs=[
                pl.BlockSpec(memory_space=pltpu.MemorySpace.SMEM),  # scalar param
                pl.BlockSpec((tile_rows, lane), lambda i: (i, 0)),
            ],
            out_specs=pl.BlockSpec((tile_rows, lane), lambda i: (i, 0)),
        ),
        compiler_params=pltpu.CompilerParams(
            dimension_semantics=("parallel",),
        ),
    )(scale_arr, x2d)


def scale_forward(x: jax.Array, scale: jax.Array, *,
                  min_pallas_bytes: int = _SMALL_FALLBACK_BYTES) -> jax.Array:
    """y = x * scale with the elementwise multiply done in a Pallas TPU kernel."""
    orig_shape = x.shape
    n_total = x.size
    if n_total == 0:
        return x

    dtype = x.dtype
    itemsize = jnp.dtype(dtype).itemsize
    scale_arr = jnp.reshape(scale, (1,)).astype(jnp.float32)

    # Non-float inputs: let JAX promotion handle it (PyTorch promotes
    # int * float-tensor to float); avoids truncating the learnable scale.
    if not jnp.issubdtype(dtype, jnp.floating):
        return x * scale_arr[0]

    # Small-tensor fallback: launch overhead dominates; let XLA fuse it.
    if n_total * itemsize < min_pallas_bytes:
        return (x.astype(jnp.float32) * scale_arr[0]).astype(dtype)

    if n_total % _LANE == 0:
        # Zero-copy contiguous reshape to a lane-dense slab: 1 read + 1 write.
        x2d = x.reshape(n_total // _LANE, _LANE)
        return _scale_2d(x2d, scale_arr).reshape(orig_shape)

    # Ragged element count: kernel on the lane-aligned prefix, plain multiply
    # on the <128-element tail (no full-array pad/unpad round trips).
    n_main = (n_total // _LANE) * _LANE
    x_flat = x.reshape(-1)
    if n_main == 0:
        return (x.astype(jnp.float32) * scale_arr[0]).astype(dtype)
    main = _scale_2d(x_flat[:n_main].reshape(-1, _LANE), scale_arr).reshape(-1)
    tail = (x_flat[n_main:].astype(jnp.float32) * scale_arr[0]).astype(dtype)
    return jnp.concatenate([main, tail]).reshape(orig_shape)


class ScalePallas:
    """Mirror of the PyTorch Scale module (learnable scalar, init_value=1.0)."""

    def __init__(self, init_value: float = 1.0):
        self.scale = jnp.array(init_value, dtype=jnp.float32)

    def __call__(self, x):
        return scale_forward(x, self.scale)


if __name__ == "__main__":
    key = jax.random.PRNGKey(0)
    module = ScalePallas(init_value=1.5)

    def ref(x):
        return (x.astype(jnp.float32) * module.scale).astype(x.dtype)

    # 1) Spec-sized FCOS head map (2,4,16,16): small-tensor fast path.
    x_small = jax.random.normal(key, (2, 4, 16, 16), dtype=jnp.float32)
    y_small = jax.block_until_ready(module(x_small))
    assert y_small.shape == x_small.shape and y_small.dtype == x_small.dtype
    assert jnp.allclose(y_small, ref(x_small), atol=1e-6, rtol=1e-6)

    # 2) Same small tensor forced through the Pallas kernel.
    y_small_k = jax.block_until_ready(
        scale_forward(x_small, module.scale, min_pallas_bytes=0))
    assert y_small_k.shape == x_small.shape and y_small_k.dtype == x_small.dtype
    assert jnp.allclose(y_small_k, ref(x_small), atol=1e-6, rtol=1e-6)

    # 3) FPN-level map large enough to take the Pallas path by default (512 KiB).
    x_big = jax.random.normal(jax.random.PRNGKey(0), (2, 4, 128, 128),
                              dtype=jnp.float32)
    y_big = jax.block_until_ready(module(x_big))
    assert y_big.shape == x_big.shape and y_big.dtype == x_big.dtype
    assert jnp.allclose(y_big, ref(x_big), atol=1e-6, rtol=1e-6)

    # 4) bf16 input with a ragged element count (not a multiple of 128):
    #    Pallas on the aligned prefix, jnp on the 7-element tail.
    x_rag = jax.random.normal(jax.random.PRNGKey(0), (3, 5, 67, 67),
                              dtype=jnp.bfloat16)
    y_rag = jax.block_until_ready(
        scale_forward(x_rag, module.scale, min_pallas_bytes=0))
    assert y_rag.shape == x_rag.shape and y_rag.dtype == x_rag.dtype
    assert jnp.allclose(y_rag.astype(jnp.float32), ref(x_rag).astype(jnp.float32),
                        atol=1e-2, rtol=1e-2)

    print("KERNEL_OK")
</pallas_src>

<mosaic_0001>
module attributes {stable_mosaic.version = 11 : i64} {
  func.func @_scale_kernel(%arg0: i32, %arg1: memref<1xf32, #tpu.memory_space<smem>>, %arg2: memref<16x128xf32, #tpu.memory_space<vmem>>, %arg3: memref<16x128xf32, #tpu.memory_space<vmem>>) attributes {dimension_semantics = [#tpu.dimension_semantics<parallel>], iteration_bounds = array<i64: 1>, scalar_prefetch = 0 : i64, scratch_operands = 0 : i64, tpu.core_type = #tpu.core_type<tc>, window_params = [{transform_indices = @transform_0, window_bounds = array<i64: 1>}, {transform_indices = @transform_1, window_bounds = array<i64: 16, 128>}, {transform_indices = @transform_2, window_bounds = array<i64: 16, 128>}]} {
    %c0 = arith.constant 0 : index
    %c0_0 = arith.constant 0 : index
    %0 = vector.load %arg2[%c0, %c0_0] : memref<16x128xf32, #tpu.memory_space<vmem>>, vector<16x128xf32>
    %c0_1 = arith.constant 0 : index
    %1 = memref.load %arg1[%c0_1] : memref<1xf32, #tpu.memory_space<smem>>
    %2 = vector.broadcast %1 : f32 to vector<16x128xf32>
    %3 = arith.mulf %0, %2 : vector<16x128xf32>
    %c0_2 = arith.constant 0 : index
    %c0_3 = arith.constant 0 : index
    %4 = vector.load %arg3[%c0_2, %c0_3] : memref<16x128xf32, #tpu.memory_space<vmem>>, vector<16x128xf32>
    tpu.vector_store %arg3[%c0_2, %c0_3], %3 {strides = array<i32>} : memref<16x128xf32, #tpu.memory_space<vmem>>, vector<16x128xf32>,
    return
  }
  func.func @transform_0(%arg0: i32) -> i32 {
    %c0_i32 = arith.constant 0 : i32
    %c0_i32_0 = arith.constant 0 : i32
    return %c0_i32 : i32
  }
  func.func @transform_1(%arg0: i32) -> (i32, i32) {
    %c0_i32 = arith.constant 0 : i32
    %c0_i32_0 = arith.constant 0 : i32
    return %arg0, %c0_i32 : i32, i32
  }
  func.func @transform_2(%arg0: i32) -> (i32, i32) {
    %c0_i32 = arith.constant 0 : i32
    %c0_i32_0 = arith.constant 0 : i32
    return %arg0, %c0_i32 : i32, i32
  }
}

</mosaic_0001>

<llo_original>
// kernel: tpu_custom_call.1
$region0: #{tpu_custom_call.1}
  #allocation0 [shape = 'u32[]', space=smem, size = 0x4, offset = 0x4, fixed_abs, tag = 'smem constant byte address 0x4 - core index']
  #allocation1 [shape = 'u32[72,128]{1,0:T(1,128)}', space=vmem, size = 0x9000, scoped, tag = 'internal scratch']
  #allocation2 [shape = 'f32[1]{0:T(128)S(6)}', space=smem, size = 0x200, scoped, tag = 'scoped memory for tpu_custom_call.1']
  %s0 = inlined_call_operand.<no memory space> [shape: f32[1], index: 0, kind: input, shape index: {}]
  %s1 = inlined_call_operand.hbm [shape: f32[16,128], index: 1, kind: input, shape index: {}]
  %s2 = inlined_call_operand.hbm [shape: f32[16,128], index: 2, kind: output, shape index: {}]
  %s3 = sld [smem:[#allocation0]]
  $region22: #{tpu_custom_call.1} parent=0
    _
  %s5 = ssub.s32 1, %s3
  %s6 = scalar_select 0, %s5, %s3
  %7 = sst [smem:[#allocation2]] %s0
  $region1: #{tpu_custom_call.1} parent=0
    #allocation3 [shape = 'u8[8192]{0}', space=vmem, size = 0x2000, scoped, tag = 'input window, operand 1, single buffered']
    #allocation4 [shape = 's32[1]{0}', space=sflag, size = 0x4, scoped, tag = 'scoped memory for tpu_custom_call.1']
    #allocation5 [shape = 's32[1]{0}', space=sflag, size = 0x4, scoped, tag = 'scoped memory for tpu_custom_call.1']
    #allocation6 [shape = 'u8[8192]{0}', space=vmem, size = 0x2000, scoped, tag = 'output window, operand 0, single buffered']
    %8 = vsyncpa [#allocation4], 0
    %9 = vsyncpa [#allocation5], 0
    // Predicated region
    $region2: #{tpu_custom_call.1} parent=1 // pred_check
      _
    $region3: #{tpu_custom_call.1} parent=1 // pred_check_branch
      %11 = sbr.rel (0) target = $region5
    $region4: #{tpu_custom_call.1} parent=1 // pred_region
      _
    $region5: #{tpu_custom_call.1} parent=1 // pred_fallthru
      _
    // Predicated region
    $region6: #{tpu_custom_call.1} parent=1 // pred_check
      _
    $region7: #{tpu_custom_call.1} parent=1 // pred_check_branch
      %13 = sbr.rel (0) target = $region9
    $region8: #{tpu_custom_call.1} parent=1 // pred_region
      %15 = vsyncadd [#allocation4], 0
      %s16 = sshll.u32 %s1, 4
      %s17 = int_to_ptr.hbm [resolvable:$true] %s16
      %s18 = sshll.u32 [#allocation3], 4
      %s19 = int_to_ptr.vmem [resolvable:$true] %s18
      %24 = dma.hbm_to_vmem [thread:$0]  %s17, 256, %s19, [#allocation4], 128, 128, 8
    $region9: #{tpu_custom_call.1} parent=1 // pred_fallthru
      _
    // Predicated region
    $region10: #{tpu_custom_call.1} parent=1 // pred_check
      _
    $region11: #{tpu_custom_call.1} parent=1 // pred_check_branch
      %26 = sbr.rel (0) target = $region13
    $region12: #{tpu_custom_call.1} parent=1 // pred_region
      %28 = dma.done [#allocation4], 256
    $region13: #{tpu_custom_call.1} parent=1 // pred_fallthru
      _
    %v29 = vld [vmem:[#allocation3] sm:$0xff]
    %v30 = vld [vmem:[#allocation3 + $0x8] sm:$0xff]
    %s31 = sld [smem:[#allocation2]]
    %v32 = vstv %s31
    %v33 = vmul.f32 %v29, %v32
    %v34 = vmul.f32 %v30, %v32
    %35 = vst [vmem:[#allocation6] sm:$0xff] %v33
    %36 = vst [vmem:[#allocation6 + $0x8] sm:$0xff] %v34
    // Predicated region
    $region14: #{tpu_custom_call.1} parent=1 // pred_check
      _
    $region15: #{tpu_custom_call.1} parent=1 // pred_check_branch
      %38 = sbr.rel (0) target = $region17
    $region16: #{tpu_custom_call.1} parent=1 // pred_region
      %40 = vsyncadd [#allocation5], 0
      %s41 = sshll.u32 [#allocation6], 4
      %s42 = int_to_ptr.vmem [resolvable:$true] %s41
      %s43 = sshll.u32 %s2, 4
      %s44 = int_to_ptr.hbm [resolvable:$true] %s43
      %49 = dma.vmem_to_hbm [thread:$0]  %s42, 256, %s44, [#allocation5], 128, 128, 8
    $region17: #{tpu_custom_call.1} parent=1 // pred_fallthru
      _
    // Predicated region
    $region18: #{tpu_custom_call.1} parent=1 // pred_check
      _
    $region19: #{tpu_custom_call.1} parent=1 // pred_check_branch
      %51 = sbr.rel (0) target = $region21
    $region20: #{tpu_custom_call.1} parent=1 // pred_region
      %53 = dma.done [#allocation5], 256
    $region21: #{tpu_custom_call.1} parent=1 // pred_fallthru
      _
    %54 = vsyncpa [#allocation4], 1
    %55 = vsyncpa [#allocation5], 1

</llo_original>
